<compile_context>
chip_gen: v7x
topology: tpu7x:2x2x1
jax: 0.10.0
libtpu: 0.0.40
codegen_flags: <defaults>
</compile_context>

<pallas_src>
import functools

import jax
import jax.numpy as jnp
from jax import lax
from jax.experimental import pallas as pl
from jax.experimental.pallas import tpu as pltpu


def _ls_ce_kernel(x_ref, tgt_ref, loss_ref, *, smoothing):
    """Label-smoothing CE for one batch tile; writes (TB, 1) per-row losses."""
    x = x_ref[...].astype(jnp.float32)                      # (TB, C)
    tb, c = x.shape

    # numerically stable log-softmax pieces (logprobs never materialized)
    m = jnp.max(x, axis=-1, keepdims=True)                  # (TB, 1)
    shifted = x - m                                         # (TB, C)
    lse = jnp.log(jnp.sum(jnp.exp(shifted), axis=-1, keepdims=True))   # (TB, 1)
    sum_shifted = jnp.sum(shifted, axis=-1, keepdims=True)              # (TB, 1)

    # shifted[target] via a one-hot select (no dynamic gather on TPU)
    tgt = tgt_ref[...]                                      # (TB, 1) int32
    col_ids = lax.broadcasted_iota(jnp.int32, (tb, c), 1)   # (TB, C)
    tgt_shifted = jnp.sum(
        jnp.where(col_ids == tgt, shifted, 0.0), axis=-1, keepdims=True
    )                                                       # (TB, 1)

    nll = lse - tgt_shifted                                 # -logprob[target]
    smooth = lse - sum_shifted * jnp.float32(1.0 / c)       # -mean(logprobs)

    loss_ref[...] = (
        jnp.float32(1.0 - smoothing) * nll + jnp.float32(smoothing) * smooth
    )


def _vmem_budget_bytes():
    """Scoped VMEM budget derived from the actual chip (v7x has only 64 MiB)."""
    try:
        cap = int(pltpu.get_tpu_info().vmem_capacity_bytes)
    except Exception:
        cap = 64 * 1024 * 1024
    return min(cap // 2, 64 * 1024 * 1024)


def _pick_block_rows(n, c, itemsize, budget_bytes):
    """Largest row tile under the VMEM budget, honoring sublane packing."""
    row_mult = max(8, 32 // itemsize)          # 8 f32 / 16 bf16 / 32 int8
    # per-row VMEM: double-buffered logits tile + a few f32 C-wide
    # intermediates + lane-padded target/output double buffers.
    per_row = 2 * c * itemsize + 3 * c * 4 + 2048
    max_rows = int(budget_bytes * 0.7) // per_row
    max_rows = max(row_mult, (max_rows // row_mult) * row_mult)
    block_rows = min(max_rows, 1024)
    if n <= block_rows:
        return n                                # single block == full array dim (always legal)
    # balance tiles so the masked tail block wastes as little compute as possible
    num_tiles = -(-n // block_rows)
    balanced = -(-n // num_tiles)
    return -(-balanced // row_mult) * row_mult  # multiple of row_mult, <= block_rows <= n


def label_smoothing_cross_entropy(x, target, smoothing=0.1, block_rows=None):
    """x: (N, C) logits (f32 or bf16); target: (N,) int class ids. Scalar mean loss."""
    assert smoothing < 1.0
    n, c = x.shape
    itemsize = jnp.dtype(x.dtype).itemsize

    budget = _vmem_budget_bytes()
    if block_rows is None:
        block_rows = _pick_block_rows(n, c, itemsize, budget)
    block_rows = min(block_rows, n)
    num_tiles = -(-n // block_rows)             # cdiv: last block may be partial (masked)

    tgt2d = target.astype(jnp.int32).reshape(n, 1)
    kernel = functools.partial(_ls_ce_kernel, smoothing=float(smoothing))

    cost = pl.CostEstimate(
        flops=6 * n * c,
        transcendentals=n * c + n,
        bytes_accessed=n * c * itemsize + 8 * n,
    )

    per_row = pl.pallas_call(
        kernel,
        out_shape=jax.ShapeDtypeStruct((n, 1), jnp.float32),
        grid_spec=pltpu.PrefetchScalarGridSpec(
            num_scalar_prefetch=0,
            grid=(num_tiles,),
            in_specs=[
                pl.BlockSpec((block_rows, c), lambda i: (i, 0)),
                pl.BlockSpec((block_rows, 1), lambda i: (i, 0)),
            ],
            out_specs=pl.BlockSpec((block_rows, 1), lambda i: (i, 0)),
        ),
        compiler_params=pltpu.CompilerParams(
            dimension_semantics=("parallel",),   # independent tiles -> megacore on v7x
            vmem_limit_bytes=budget,
        ),
        cost_estimate=cost,
    )(x, tgt2d)

    # final mean over the real rows (tiny tree reduction in XLA)
    return jnp.sum(per_row) / jnp.float32(n)


def _reference(x, target, smoothing=0.1):
    logprobs = jax.nn.log_softmax(x.astype(jnp.float32), axis=-1)
    nll = -jnp.take_along_axis(
        logprobs, target[:, None].astype(jnp.int32), axis=-1
    )[:, 0]
    smooth = -jnp.mean(logprobs, axis=-1)
    loss = (1.0 - smoothing) * nll + smoothing * smooth
    return jnp.mean(loss)


if __name__ == "__main__":
    key = jax.random.PRNGKey(0)
    kx, kt = jax.random.split(key)

    # (N, C) logits + (N,) targets, small shapes consistent with the module's forward
    N, C = 8, 32
    x = jax.random.normal(kx, (N, C), dtype=jnp.float32)
    target = jax.random.randint(kt, (N,), 0, C, dtype=jnp.int32)
    loss = jax.block_until_ready(label_smoothing_cross_entropy(x, target, smoothing=0.1))
    ref = _reference(x, target, smoothing=0.1)
    assert jnp.allclose(loss, ref, atol=1e-5, rtol=1e-5), (loss, ref)

    # batch not a multiple of 8 (single full-array block, no padding needed)
    N2, C2 = 13, 40
    x2 = jax.random.normal(kx, (N2, C2), dtype=jnp.float32)
    target2 = jax.random.randint(kt, (N2,), 0, C2, dtype=jnp.int32)
    loss2 = jax.block_until_ready(label_smoothing_cross_entropy(x2, target2, smoothing=0.1))
    ref2 = _reference(x2, target2, smoothing=0.1)
    assert jnp.allclose(loss2, ref2, atol=1e-5, rtol=1e-5), (loss2, ref2)

    # multi-tile + partial (masked) final block path (forced small tile)
    N3, C3 = 50, 128
    x3 = jax.random.normal(kx, (N3, C3), dtype=jnp.float32)
    target3 = jax.random.randint(kt, (N3,), 0, C3, dtype=jnp.int32)
    loss3 = jax.block_until_ready(
        label_smoothing_cross_entropy(x3, target3, smoothing=0.1, block_rows=16)
    )
    ref3 = _reference(x3, target3, smoothing=0.1)
    assert jnp.allclose(loss3, ref3, atol=1e-5, rtol=1e-5), (loss3, ref3)

    # bf16 logits stay bf16 over the DMA and are upcast in-kernel
    N4, C4 = 24, 64
    x4 = jax.random.normal(kx, (N4, C4), dtype=jnp.bfloat16)
    target4 = jax.random.randint(kt, (N4,), 0, C4, dtype=jnp.int32)
    loss4 = jax.block_until_ready(label_smoothing_cross_entropy(x4, target4, smoothing=0.1))
    ref4 = _reference(x4, target4, smoothing=0.1)
    assert jnp.allclose(loss4, ref4, atol=1e-4, rtol=1e-4), (loss4, ref4)

    print("KERNEL_OK")
</pallas_src>

<mosaic_0001>
module attributes {stable_mosaic.version = 11 : i64} {
  func.func @_ls_ce_kernel(%arg0: i32, %arg1: memref<8x32xf32, #tpu.memory_space<vmem>>, %arg2: memref<8x1xi32, #tpu.memory_space<vmem>>, %arg3: memref<8x1xf32, #tpu.memory_space<vmem>>) attributes {dimension_semantics = [#tpu.dimension_semantics<parallel>], iteration_bounds = array<i64: 1>, scalar_prefetch = 0 : i64, scratch_operands = 0 : i64, tpu.core_type = #tpu.core_type<tc>, window_params = [{transform_indices = @transform_0, window_bounds = array<i64: 8, 32>}, {transform_indices = @transform_1, window_bounds = array<i64: 8, 1>}, {transform_indices = @transform_2, window_bounds = array<i64: 8, 1>}]} {
    %c0 = arith.constant 0 : index
    %c0_0 = arith.constant 0 : index
    %0 = vector.load %arg1[%c0, %c0_0] : memref<8x32xf32, #tpu.memory_space<vmem>>, vector<8x32xf32>
    %cst = arith.constant dense<0xFF800000> : vector<8xf32>
    %1 = vector.multi_reduction <maximumf>, %0, %cst [1] : vector<8x32xf32> to vector<8xf32>
    %2 = vector.shape_cast %1 : vector<8xf32> to vector<8x1xf32>
    %3 = vector.broadcast %2 : vector<8x1xf32> to vector<8x32xf32>
    %4 = arith.subf %0, %3 : vector<8x32xf32>
    %5 = math.exp %4 : vector<8x32xf32>
    %cst_1 = arith.constant dense<0.000000e+00> : vector<8xf32>
    %6 = vector.multi_reduction <add>, %5, %cst_1 [1] : vector<8x32xf32> to vector<8xf32>
    %7 = vector.shape_cast %6 : vector<8xf32> to vector<8x1xf32>
    %8 = math.log %7 : vector<8x1xf32>
    %cst_2 = arith.constant dense<0.000000e+00> : vector<8xf32>
    %9 = vector.multi_reduction <add>, %4, %cst_2 [1] : vector<8x32xf32> to vector<8xf32>
    %10 = vector.shape_cast %9 : vector<8xf32> to vector<8x1xf32>
    %c0_3 = arith.constant 0 : index
    %c0_4 = arith.constant 0 : index
    %11 = vector.load %arg2[%c0_3, %c0_4] : memref<8x1xi32, #tpu.memory_space<vmem>>, vector<8x1xi32>
    %12 = tpu.iota {dimensions = array<i32: 1>} : vector<8x32xi32>
    %13 = vector.broadcast %11 : vector<8x1xi32> to vector<8x32xi32>
    %14 = arith.cmpi eq, %12, %13 : vector<8x32xi32>
    %cst_5 = arith.constant 0.000000e+00 : f32
    %15 = vector.broadcast %cst_5 : f32 to vector<8x32xf32>
    %16 = arith.select %14, %4, %15 : vector<8x32xi1>, vector<8x32xf32>
    %cst_6 = arith.constant dense<0.000000e+00> : vector<8xf32>
    %17 = vector.multi_reduction <add>, %16, %cst_6 [1] : vector<8x32xf32> to vector<8xf32>
    %18 = vector.shape_cast %17 : vector<8xf32> to vector<8x1xf32>
    %19 = arith.subf %8, %18 : vector<8x1xf32>
    %cst_7 = arith.constant 3.125000e-02 : f32
    %20 = vector.broadcast %cst_7 : f32 to vector<8x1xf32>
    %21 = arith.mulf %10, %20 : vector<8x1xf32>
    %22 = arith.subf %8, %21 : vector<8x1xf32>
    %cst_8 = arith.constant 0.899999976 : f32
    %23 = vector.broadcast %cst_8 : f32 to vector<8x1xf32>
    %24 = arith.mulf %23, %19 : vector<8x1xf32>
    %cst_9 = arith.constant 1.000000e-01 : f32
    %25 = vector.broadcast %cst_9 : f32 to vector<8x1xf32>
    %26 = arith.mulf %25, %22 : vector<8x1xf32>
    %27 = arith.addf %24, %26 : vector<8x1xf32>
    %c0_10 = arith.constant 0 : index
    %c0_11 = arith.constant 0 : index
    %28 = vector.load %arg3[%c0_10, %c0_11] : memref<8x1xf32, #tpu.memory_space<vmem>>, vector<8x1xf32>
    tpu.vector_store %arg3[%c0_10, %c0_11], %27 {strides = array<i32>} : memref<8x1xf32, #tpu.memory_space<vmem>>, vector<8x1xf32>,
    return
  }
  func.func @transform_0(%arg0: i32) -> (i32, i32) {
    %c0_i32 = arith.constant 0 : i32
    %c0_i32_0 = arith.constant 0 : i32
    return %arg0, %c0_i32 : i32, i32
  }
  func.func @transform_1(%arg0: i32) -> (i32, i32) {
    %c0_i32 = arith.constant 0 : i32
    %c0_i32_0 = arith.constant 0 : i32
    return %arg0, %c0_i32 : i32, i32
  }
  func.func @transform_2(%arg0: i32) -> (i32, i32) {
    %c0_i32 = arith.constant 0 : i32
    %c0_i32_0 = arith.constant 0 : i32
    return %arg0, %c0_i32 : i32, i32
  }
}

</mosaic_0001>

<llo_original>
// kernel: tpu_custom_call.1
$region0: #{tpu_custom_call.1}
  #allocation0 [shape = 'u32[]', space=smem, size = 0x4, offset = 0x4, fixed_abs, tag = 'smem constant byte address 0x4 - core index']
  #allocation1 [shape = 'u32[144,128]{1,0:T(1,128)}', space=vmem, size = 0x12000, scoped, tag = 'internal scratch']
  %s0 = inlined_call_operand.vmem [shape: f32[8,32], index: 0, kind: input, shape index: {}]
  %s1 = inlined_call_operand.vmem [shape: s32[8,1], index: 1, kind: input, shape index: {}]
  %s2 = inlined_call_operand.vmem [shape: f32[8,1], index: 2, kind: output, shape index: {}]
  %s3 = sld [smem:[#allocation0]]
  $region18: #{tpu_custom_call.1} parent=0
    _
  %s5 = ssub.s32 1, %s3
  %s6 = scalar_select 0, %s5, %s3
  // Predicated region
  $region2: #{tpu_custom_call.1} parent=0 // pred_check
    _
  $region3: #{tpu_custom_call.1} parent=0 // pred_check_branch
    %8 = sbr.rel (0) target = $region5
  $region4: #{tpu_custom_call.1} parent=0 // pred_region
    _
  $region5: #{tpu_custom_call.1} parent=0 // pred_fallthru
    _
  // Predicated region
  $region6: #{tpu_custom_call.1} parent=0 // pred_check
    _
  $region7: #{tpu_custom_call.1} parent=0 // pred_check_branch
    %10 = sbr.rel (0) target = $region9
  $region8: #{tpu_custom_call.1} parent=0 // pred_region
    _
  $region9: #{tpu_custom_call.1} parent=0 // pred_fallthru
    _
  %v11 = vld [vmem:[%s0] sm:$0xff]
  %vm12 = vcmask 261120
  %v13 = vsel %vm12, %v11, -inf
  %14 = vmax.xlane.f32.xlu0 %v13
  %v15 = vpop.xlane.xlu0 %14
  %v16 = vsub.f32 %v11, %v15
  %v17 = vmul.f32 %v16, 1.442695
  %v18 = vpow.pop %v17
  %v19 = vsel %vm12, %v18, 0.0
  %20 = vadd.xlane.f32.xlu0 %v19
  %v21 = vpop.xlane.xlu0 %20
  %v22 = vlog2.pop %v21
  %v23 = vmul.f32 %v22, 0.6931472
  %v24 = vsel %vm12, %v16, 0.0
  %25 = vadd.xlane.f32.xlu0 %v24
  %v26 = vpop.xlane.xlu0 %25
  %v27 = vld [vmem:[%s1] sm:$0xff]
  %v28 = vlaneseq
  %v29 = vand.u32 %v28, 127
  %30 = vset.pattern.permute.xlu0 0
  %31 = vperm.xlu0 %30, %v27
  %v32 = vpop.permute.xlu0 %31
  %vm33 = vcmp.eq.s32.totalorder %v29, %v32
  %v34 = vsel %vm33, %v16, 0.0
  %v35 = vsel %vm12, %v34, 0.0
  %36 = vadd.xlane.f32.xlu0 %v35
  %v37 = vpop.xlane.xlu0 %36
  %v38 = vsub.f32 %v23, %v37
  %v39 = vmul.f32 %v26, 0.03125
  %v40 = vsub.f32 %v23, %v39
  %v41 = vmul.f32 %v38, 0.9
  %v42 = vmul.f32 %v40, 0.1
  %v43 = vadd.f32 %v41, %v42
  %vm44 = vcmask 7168
  %45 = vst.msk [vmem:[%s2] sm:$0xff] %vm44, %v43
  // Predicated region
  $region10: #{tpu_custom_call.1} parent=0 // pred_check
    _
  $region11: #{tpu_custom_call.1} parent=0 // pred_check_branch
    %47 = sbr.rel (0) target = $region13
  $region12: #{tpu_custom_call.1} parent=0 // pred_region
    _
  $region13: #{tpu_custom_call.1} parent=0 // pred_fallthru
    _
  // Predicated region
  $region14: #{tpu_custom_call.1} parent=0 // pred_check
    _
  $region15: #{tpu_custom_call.1} parent=0 // pred_check_branch
    %49 = sbr.rel (0) target = $region17
  $region16: #{tpu_custom_call.1} parent=0 // pred_region
    _
  $region17: #{tpu_custom_call.1} parent=0 // pred_fallthru
    _

</llo_original>
